<compile_context>
chip_gen: v5e
topology: v5e:2x2
jax: 0.10.0
libtpu: 0.0.40
codegen_flags: <defaults>
</compile_context>

<pallas_src>
import functools

import jax
import jax.numpy as jnp
from jax import lax
from jax.experimental import pallas as pl
from jax.experimental.pallas import tpu as pltpu


def _spectral_mix_kernel(a_ref, w_ref, o_ref):
    """Complex channel mixing for one (corner, batch-block) grid point.

    a_ref: [Bt, 2, Ci, M]   dim 1: 0 = Re(x_ft), 1 = Im(x_ft)
    w_ref: [2, Ci, Co, M]   dim 0: 0 = Re(w),    1 = Im(w)
    o_ref: [Bt, 2, Co, M]   dim 1: 0 = Re(out),  1 = Im(out)
    """
    bt = a_ref.shape[0]
    ci = a_ref.shape[2]
    co = o_ref.shape[2]
    m = o_ref.shape[3]

    # Per-batch accumulation keeps live state at one [Co, M] accumulator pair
    # (plus one channel slice), independent of Ci -- no spills at large Ci.
    for b in range(bt):
        acc_re = jnp.zeros((co, m), jnp.float32)
        acc_im = jnp.zeros((co, m), jnp.float32)

        if ci <= 8:
            # Small channel counts: fully unrolled, static ref slices.
            for i in range(ci):
                ar = a_ref[b, 0, i:i + 1, :]          # [1, M]
                ai = a_ref[b, 1, i:i + 1, :]          # [1, M]
                wr = w_ref[0, i]                      # [Co, M]
                wi = w_ref[1, i]                      # [Co, M]
                acc_re = acc_re + (ar * wr - ai * wi)
                acc_im = acc_im + (ar * wi + ai * wr)
        else:
            # Large channel counts: bounded live ranges via fori_loop, modest
            # unroll so operand streaming hides under the 4 VALU slots.
            def body(i, carry):
                acc_re, acc_im = carry
                ar = a_ref[b, 0, pl.ds(i, 1), :]      # [1, M]
                ai = a_ref[b, 1, pl.ds(i, 1), :]      # [1, M]
                wr = w_ref[0, i]                      # [Co, M]
                wi = w_ref[1, i]                      # [Co, M]
                acc_re = acc_re + (ar * wr - ai * wi)
                acc_im = acc_im + (ar * wi + ai * wr)
                return acc_re, acc_im

            acc_re, acc_im = lax.fori_loop(0, ci, body, (acc_re, acc_im),
                                           unroll=4)

        o_ref[b, 0] = acc_re
        o_ref[b, 1] = acc_im


def _vmem_budget_bytes():
    """Generation-aware VMEM budget (v5e/v6e: 128 MiB, v7x: 64 MiB physical)."""
    try:
        cap = pltpu.get_tpu_info().vmem_capacity_bytes
    except Exception:
        cap = 64 * 1024 * 1024  # conservative (v7x-sized) fallback
    return int(cap * 3 // 4)    # leave headroom for compiler-internal scratch


def _pick_batch_tile(B, Ci, Co, M, budget_bytes):
    """Largest batch tile (<= 8, divides B) whose blocks fit the VMEM budget."""
    # Double-buffered activation + output blocks plus double-buffered weights.
    w_bytes = 2 * (2 * Ci * Co * M * 4)
    per_b = 2 * (2 * Ci * M * 4) + 2 * (2 * Co * M * 4)
    avail = max(budget_bytes - w_bytes, per_b)
    bt = max(1, min(B, 8, avail // per_b))
    while B % bt:
        bt -= 1
    return bt


def _compl_mul2d_fused(a_packed, w_packed, B, Ci, Co, M):
    """Fused complex channel mixing for both corners.

    a_packed: [2(corner), B, 2(re/im), Ci, M] float32
    w_packed: [2(corner), 2(re/im), Ci, Co, M] float32
    returns:  [2(corner), B, 2(re/im), Co, M] float32
    """
    budget = _vmem_budget_bytes()
    Bt = _pick_batch_tile(B, Ci, Co, M, budget)
    nb = B // Bt

    # Per-call VMEM need (double-buffered blocks); used both as an advisory
    # limit and to keep the request sane on v7x's 64 MiB.
    a_block = Bt * 2 * Ci * M * 4
    o_block = Bt * 2 * Co * M * 4
    w_block = 2 * Ci * Co * M * 4
    need = 2 * (a_block + o_block + w_block)
    vmem_limit = int(min(max(4 * need, 32 * 1024 * 1024), budget))
    vmem_limit = max(vmem_limit, 2 * need)

    flops = 8 * 2 * B * Ci * Co * M                       # 2 corners, complex MACs
    bytes_accessed = 4 * (a_packed.size + w_packed.size + 2 * B * 2 * Co * M)

    # NOTE: last-two block dims (Ci,M)/(Co,M) are full-extent, so the (8,128)
    # constraint is satisfied even for tiny mode counts (M = 16 here).
    # Weight block index only changes with the corner axis; with batch as the
    # innermost grid axis the weight block stays VMEM-resident across batches.
    # (On v7x, pipeline_mode=pl.Buffered(1) on the weight spec would halve its
    # residency further; left at the default double-buffer for portability.)
    grid_spec = pltpu.PrefetchScalarGridSpec(
        num_scalar_prefetch=0,
        grid=(2, nb),                                     # (corner, batch-block)
        in_specs=[
            pl.BlockSpec((None, Bt, 2, Ci, M), lambda c, b: (c, b, 0, 0, 0)),
            pl.BlockSpec((None, 2, Ci, Co, M), lambda c, b: (c, 0, 0, 0, 0)),
        ],
        out_specs=pl.BlockSpec((None, Bt, 2, Co, M), lambda c, b: (c, b, 0, 0, 0)),
    )
    return pl.pallas_call(
        _spectral_mix_kernel,
        out_shape=jax.ShapeDtypeStruct((2, B, 2, Co, M), jnp.float32),
        grid_spec=grid_spec,
        compiler_params=pltpu.CompilerParams(
            # corner is a 2-wide parallel axis -> both v7x TensorCores get work
            dimension_semantics=("parallel", "parallel"),
            vmem_limit_bytes=vmem_limit,
        ),
        cost_estimate=pl.CostEstimate(
            flops=flops, transcendentals=0, bytes_accessed=bytes_accessed),
    )(a_packed, w_packed)


@functools.partial(jax.jit, static_argnums=(5, 6))
def spectral_conv2d_forward(x, w1_r, w1_i, w2_r, w2_i, modes1, modes2):
    """Forward pass matching SpectralConv2d.forward (PyTorch, NCHW, complex64)."""
    B, Ci, H, W = x.shape
    Co = w1_r.shape[1]
    M = modes1 * modes2
    Wf = W // 2 + 1

    # TODO(synk): rfft2 / irfft2 have no Pallas TPU primitive; kept in plain JAX.
    x_ft = jnp.fft.rfft2(x)                               # [B, Ci, H, Wf] complex64

    # Both spectral corners, packed as one contiguous [corner, B, re/im, Ci, M]
    # slab so each grid step DMAs a single contiguous block.
    # TODO(synk): feeding x_ft corners directly (scalar-prefetched row offset on
    # the H axis) would remove these packing passes, but the H-modes1 offset is
    # not sublane-aligned for general H, so the packing stays in JAX.
    top = x_ft[:, :, :modes1, :modes2]
    bot = x_ft[:, :, H - modes1:, :modes2]
    corners = jnp.stack([top, bot], axis=0)               # [2, B, Ci, m1, m2] c64
    a_packed = jnp.stack([jnp.real(corners), jnp.imag(corners)], axis=2)
    a_packed = a_packed.astype(jnp.float32).reshape(2, B, 2, Ci, M)

    # Weights for both corners: 2 planes (re, im) only -- the 3-plane packing
    # bought nothing on the VALU slot but cost 50% extra weight DMA/VMEM.
    w_packed = jnp.stack(
        [jnp.stack([w1_r, w1_i], axis=0), jnp.stack([w2_r, w2_i], axis=0)],
        axis=0).astype(jnp.float32).reshape(2, 2, Ci, Co, M)

    o_packed = _compl_mul2d_fused(a_packed, w_packed, B, Ci, Co, M)
    out_c = (o_packed[:, :, 0] + 1j * o_packed[:, :, 1]).astype(jnp.complex64)
    out_c = out_c.reshape(2, B, Co, modes1, modes2)

    # TODO(synk): corner scatter into the full spectrum stays in JAX (fuses with
    # the zeros under jit); writing out_ft straight from the kernel would need a
    # grid covering the zero regions, which doesn't tile cleanly for general H.
    out_ft = jnp.zeros((B, Co, H, Wf), dtype=jnp.complex64)
    out_ft = out_ft.at[:, :, :modes1, :modes2].set(out_c[0])
    out_ft = out_ft.at[:, :, H - modes1:, :modes2].set(out_c[1])

    return jnp.fft.irfft2(out_ft, s=(H, W))               # [B, Co, H, W] float32


def _reference_forward(x, w1_r, w1_i, w2_r, w2_i, modes1, modes2):
    """Pure-JAX reference (mirrors the PyTorch code 1:1)."""
    B, Ci, H, W = x.shape
    Co = w1_r.shape[1]
    w1 = (w1_r + 1j * w1_i).astype(jnp.complex64)
    w2 = (w2_r + 1j * w2_i).astype(jnp.complex64)
    x_ft = jnp.fft.rfft2(x)
    out_ft = jnp.zeros((B, Co, H, W // 2 + 1), dtype=jnp.complex64)
    out_ft = out_ft.at[:, :, :modes1, :modes2].set(
        jnp.einsum('bixy,ioxy->boxy', x_ft[:, :, :modes1, :modes2], w1))
    out_ft = out_ft.at[:, :, H - modes1:, :modes2].set(
        jnp.einsum('bixy,ioxy->boxy', x_ft[:, :, H - modes1:, :modes2], w2))
    return jnp.fft.irfft2(out_ft, s=(H, W))


if __name__ == "__main__":
    # Small shapes consistent with the module.
    B, C_in, C_out, H, W = 2, 4, 4, 16, 16
    modes1, modes2 = 4, 4
    scale = 1.0 / (C_in * C_out)

    key = jax.random.PRNGKey(0)
    kx, k1r, k1i, k2r, k2i = jax.random.split(key, 5)

    x = jax.random.normal(kx, (B, C_in, H, W), dtype=jnp.float32)
    # weights1/weights2: scale * rand(in, out, m1, m2, dtype=cfloat)
    w1_r = scale * jax.random.uniform(k1r, (C_in, C_out, modes1, modes2), jnp.float32)
    w1_i = scale * jax.random.uniform(k1i, (C_in, C_out, modes1, modes2), jnp.float32)
    w2_r = scale * jax.random.uniform(k2r, (C_in, C_out, modes1, modes2), jnp.float32)
    w2_i = scale * jax.random.uniform(k2i, (C_in, C_out, modes1, modes2), jnp.float32)

    out = spectral_conv2d_forward(x, w1_r, w1_i, w2_r, w2_i, modes1, modes2)
    out = jax.block_until_ready(out)

    ref = jax.block_until_ready(
        _reference_forward(x, w1_r, w1_i, w2_r, w2_i, modes1, modes2))

    assert out.shape == (B, C_out, H, W), out.shape
    assert out.dtype == jnp.float32, out.dtype
    assert jnp.allclose(out, ref, atol=1e-5, rtol=1e-5), "mismatch vs reference"

    print("KERNEL_OK")
</pallas_src>

<mosaic_0001>
module attributes {stable_mosaic.version = 11 : i64} {
  func.func @_spectral_mix_kernel(%arg0: i32, %arg1: i32, %arg2: memref<1x2x2x4x16xf32, #tpu.memory_space<vmem>>, %arg3: memref<1x2x4x4x16xf32, #tpu.memory_space<vmem>>, %arg4: memref<1x2x2x4x16xf32, #tpu.memory_space<vmem>>) attributes {dimension_semantics = [#tpu.dimension_semantics<parallel>, #tpu.dimension_semantics<parallel>], iteration_bounds = array<i64: 2, 1>, scalar_prefetch = 0 : i64, scratch_operands = 0 : i64, tpu.core_type = #tpu.core_type<tc>, window_params = [{transform_indices = @transform_0, window_bounds = array<i64: 1, 2, 2, 4, 16>}, {transform_indices = @transform_1, window_bounds = array<i64: 1, 2, 4, 4, 16>}, {transform_indices = @transform_2, window_bounds = array<i64: 1, 2, 2, 4, 16>}]} {
    %cst = arith.constant 0.000000e+00 : f32
    %0 = vector.broadcast %cst : f32 to vector<4x16xf32>
    %cst_0 = arith.constant 0.000000e+00 : f32
    %1 = vector.broadcast %cst_0 : f32 to vector<4x16xf32>
    %c0 = arith.constant 0 : index
    %c0_1 = arith.constant 0 : index
    %c0_2 = arith.constant 0 : index
    %c0_3 = arith.constant 0 : index
    %c0_4 = arith.constant 0 : index
    %2 = vector.load %arg2[%c0, %c0_1, %c0_2, %c0_3, %c0_4] : memref<1x2x2x4x16xf32, #tpu.memory_space<vmem>>, vector<1x1x1x1x16xf32>
    %3 = vector.shape_cast %2 : vector<1x1x1x1x16xf32> to vector<1x16xf32>
    %c0_5 = arith.constant 0 : index
    %c0_6 = arith.constant 0 : index
    %c1 = arith.constant 1 : index
    %c0_7 = arith.constant 0 : index
    %c0_8 = arith.constant 0 : index
    %4 = vector.load %arg2[%c0_5, %c0_6, %c1, %c0_7, %c0_8] : memref<1x2x2x4x16xf32, #tpu.memory_space<vmem>>, vector<1x1x1x1x16xf32>
    %5 = vector.shape_cast %4 : vector<1x1x1x1x16xf32> to vector<1x16xf32>
    %c0_9 = arith.constant 0 : index
    %c0_10 = arith.constant 0 : index
    %c0_11 = arith.constant 0 : index
    %c0_12 = arith.constant 0 : index
    %c0_13 = arith.constant 0 : index
    %6 = vector.load %arg3[%c0_9, %c0_10, %c0_11, %c0_12, %c0_13] : memref<1x2x4x4x16xf32, #tpu.memory_space<vmem>>, vector<1x1x1x4x16xf32>
    %7 = vector.shape_cast %6 : vector<1x1x1x4x16xf32> to vector<4x16xf32>
    %c0_14 = arith.constant 0 : index
    %c1_15 = arith.constant 1 : index
    %c0_16 = arith.constant 0 : index
    %c0_17 = arith.constant 0 : index
    %c0_18 = arith.constant 0 : index
    %8 = vector.load %arg3[%c0_14, %c1_15, %c0_16, %c0_17, %c0_18] : memref<1x2x4x4x16xf32, #tpu.memory_space<vmem>>, vector<1x1x1x4x16xf32>
    %9 = vector.shape_cast %8 : vector<1x1x1x4x16xf32> to vector<4x16xf32>
    %10 = vector.broadcast %3 : vector<1x16xf32> to vector<4x16xf32>
    %11 = arith.mulf %10, %7 : vector<4x16xf32>
    %12 = vector.broadcast %5 : vector<1x16xf32> to vector<4x16xf32>
    %13 = arith.mulf %12, %9 : vector<4x16xf32>
    %14 = arith.subf %11, %13 : vector<4x16xf32>
    %15 = arith.addf %0, %14 : vector<4x16xf32>
    %16 = vector.broadcast %3 : vector<1x16xf32> to vector<4x16xf32>
    %17 = arith.mulf %16, %9 : vector<4x16xf32>
    %18 = vector.broadcast %5 : vector<1x16xf32> to vector<4x16xf32>
    %19 = arith.mulf %18, %7 : vector<4x16xf32>
    %20 = arith.addf %17, %19 : vector<4x16xf32>
    %21 = arith.addf %1, %20 : vector<4x16xf32>
    %c0_19 = arith.constant 0 : index
    %c0_20 = arith.constant 0 : index
    %c0_21 = arith.constant 0 : index
    %c1_22 = arith.constant 1 : index
    %c0_23 = arith.constant 0 : index
    %22 = vector.load %arg2[%c0_19, %c0_20, %c0_21, %c1_22, %c0_23] : memref<1x2x2x4x16xf32, #tpu.memory_space<vmem>>, vector<1x1x1x1x16xf32>
    %23 = vector.shape_cast %22 : vector<1x1x1x1x16xf32> to vector<1x16xf32>
    %c0_24 = arith.constant 0 : index
    %c0_25 = arith.constant 0 : index
    %c1_26 = arith.constant 1 : index
    %c1_27 = arith.constant 1 : index
    %c0_28 = arith.constant 0 : index
    %24 = vector.load %arg2[%c0_24, %c0_25, %c1_26, %c1_27, %c0_28] : memref<1x2x2x4x16xf32, #tpu.memory_space<vmem>>, vector<1x1x1x1x16xf32>
    %25 = vector.shape_cast %24 : vector<1x1x1x1x16xf32> to vector<1x16xf32>
    %c0_29 = arith.constant 0 : index
    %c0_30 = arith.constant 0 : index
    %c1_31 = arith.constant 1 : index
    %c0_32 = arith.constant 0 : index
    %c0_33 = arith.constant 0 : index
    %26 = vector.load %arg3[%c0_29, %c0_30, %c1_31, %c0_32, %c0_33] : memref<1x2x4x4x16xf32, #tpu.memory_space<vmem>>, vector<1x1x1x4x16xf32>
    %27 = vector.shape_cast %26 : vector<1x1x1x4x16xf32> to vector<4x16xf32>
    %c0_34 = arith.constant 0 : index
    %c1_35 = arith.constant 1 : index
    %c1_36 = arith.constant 1 : index
    %c0_37 = arith.constant 0 : index
    %c0_38 = arith.constant 0 : index
    %28 = vector.load %arg3[%c0_34, %c1_35, %c1_36, %c0_37, %c0_38] : memref<1x2x4x4x16xf32, #tpu.memory_space<vmem>>, vector<1x1x1x4x16xf32>
    %29 = vector.shape_cast %28 : vector<1x1x1x4x16xf32> to vector<4x16xf32>
    %30 = vector.broadcast %23 : vector<1x16xf32> to vector<4x16xf32>
    %31 = arith.mulf %30, %27 : vector<4x16xf32>
    %32 = vector.broadcast %25 : vector<1x16xf32> to vector<4x16xf32>
    %33 = arith.mulf %32, %29 : vector<4x16xf32>
    %34 = arith.subf %31, %33 : vector<4x16xf32>
    %35 = arith.addf %15, %34 : vector<4x16xf32>
    %36 = vector.broadcast %23 : vector<1x16xf32> to vector<4x16xf32>
    %37 = arith.mulf %36, %29 : vector<4x16xf32>
    %38 = vector.broadcast %25 : vector<1x16xf32> to vector<4x16xf32>
    %39 = arith.mulf %38, %27 : vector<4x16xf32>
    %40 = arith.addf %37, %39 : vector<4x16xf32>
    %41 = arith.addf %21, %40 : vector<4x16xf32>
    %c0_39 = arith.constant 0 : index
    %c0_40 = arith.constant 0 : index
    %c0_41 = arith.constant 0 : index
    %c2 = arith.constant 2 : index
    %c0_42 = arith.constant 0 : index
    %42 = vector.load %arg2[%c0_39, %c0_40, %c0_41, %c2, %c0_42] : memref<1x2x2x4x16xf32, #tpu.memory_space<vmem>>, vector<1x1x1x1x16xf32>
    %43 = vector.shape_cast %42 : vector<1x1x1x1x16xf32> to vector<1x16xf32>
    %c0_43 = arith.constant 0 : index
    %c0_44 = arith.constant 0 : index
    %c1_45 = arith.constant 1 : index
    %c2_46 = arith.constant 2 : index
    %c0_47 = arith.constant 0 : index
    %44 = vector.load %arg2[%c0_43, %c0_44, %c1_45, %c2_46, %c0_47] : memref<1x2x2x4x16xf32, #tpu.memory_space<vmem>>, vector<1x1x1x1x16xf32>
    %45 = vector.shape_cast %44 : vector<1x1x1x1x16xf32> to vector<1x16xf32>
    %c0_48 = arith.constant 0 : index
    %c0_49 = arith.constant 0 : index
    %c2_50 = arith.constant 2 : index
    %c0_51 = arith.constant 0 : index
    %c0_52 = arith.constant 0 : index
    %46 = vector.load %arg3[%c0_48, %c0_49, %c2_50, %c0_51, %c0_52] : memref<1x2x4x4x16xf32, #tpu.memory_space<vmem>>, vector<1x1x1x4x16xf32>
    %47 = vector.shape_cast %46 : vector<1x1x1x4x16xf32> to vector<4x16xf32>
    %c0_53 = arith.constant 0 : index
    %c1_54 = arith.constant 1 : index
    %c2_55 = arith.constant 2 : index
    %c0_56 = arith.constant 0 : index
    %c0_57 = arith.constant 0 : index
    %48 = vector.load %arg3[%c0_53, %c1_54, %c2_55, %c0_56, %c0_57] : memref<1x2x4x4x16xf32, #tpu.memory_space<vmem>>, vector<1x1x1x4x16xf32>
    %49 = vector.shape_cast %48 : vector<1x1x1x4x16xf32> to vector<4x16xf32>
    %50 = vector.broadcast %43 : vector<1x16xf32> to vector<4x16xf32>
    %51 = arith.mulf %50, %47 : vector<4x16xf32>
    %52 = vector.broadcast %45 : vector<1x16xf32> to vector<4x16xf32>
    %53 = arith.mulf %52, %49 : vector<4x16xf32>
    %54 = arith.subf %51, %53 : vector<4x16xf32>
    %55 = arith.addf %35, %54 : vector<4x16xf32>
    %56 = vector.broadcast %43 : vector<1x16xf32> to vector<4x16xf32>
    %57 = arith.mulf %56, %49 : vector<4x16xf32>
    %58 = vector.broadcast %45 : vector<1x16xf32> to vector<4x16xf32>
    %59 = arith.mulf %58, %47 : vector<4x16xf32>
    %60 = arith.addf %57, %59 : vector<4x16xf32>
    %61 = arith.addf %41, %60 : vector<4x16xf32>
    %c0_58 = arith.constant 0 : index
    %c0_59 = arith.constant 0 : index
    %c0_60 = arith.constant 0 : index
    %c3 = arith.constant 3 : index
    %c0_61 = arith.constant 0 : index
    %62 = vector.load %arg2[%c0_58, %c0_59, %c0_60, %c3, %c0_61] : memref<1x2x2x4x16xf32, #tpu.memory_space<vmem>>, vector<1x1x1x1x16xf32>
    %63 = vector.shape_cast %62 : vector<1x1x1x1x16xf32> to vector<1x16xf32>
    %c0_62 = arith.constant 0 : index
    %c0_63 = arith.constant 0 : index
    %c1_64 = arith.constant 1 : index
    %c3_65 = arith.constant 3 : index
    %c0_66 = arith.constant 0 : index
    %64 = vector.load %arg2[%c0_62, %c0_63, %c1_64, %c3_65, %c0_66] : memref<1x2x2x4x16xf32, #tpu.memory_space<vmem>>, vector<1x1x1x1x16xf32>
    %65 = vector.shape_cast %64 : vector<1x1x1x1x16xf32> to vector<1x16xf32>
    %c0_67 = arith.constant 0 : index
    %c0_68 = arith.constant 0 : index
    %c3_69 = arith.constant 3 : index
    %c0_70 = arith.constant 0 : index
    %c0_71 = arith.constant 0 : index
    %66 = vector.load %arg3[%c0_67, %c0_68, %c3_69, %c0_70, %c0_71] : memref<1x2x4x4x16xf32, #tpu.memory_space<vmem>>, vector<1x1x1x4x16xf32>
    %67 = vector.shape_cast %66 : vector<1x1x1x4x16xf32> to vector<4x16xf32>
    %c0_72 = arith.constant 0 : index
    %c1_73 = arith.constant 1 : index
    %c3_74 = arith.constant 3 : index
    %c0_75 = arith.constant 0 : index
    %c0_76 = arith.constant 0 : index
    %68 = vector.load %arg3[%c0_72, %c1_73, %c3_74, %c0_75, %c0_76] : memref<1x2x4x4x16xf32, #tpu.memory_space<vmem>>, vector<1x1x1x4x16xf32>
    %69 = vector.shape_cast %68 : vector<1x1x1x4x16xf32> to vector<4x16xf32>
    %70 = vector.broadcast %63 : vector<1x16xf32> to vector<4x16xf32>
    %71 = arith.mulf %70, %67 : vector<4x16xf32>
    %72 = vector.broadcast %65 : vector<1x16xf32> to vector<4x16xf32>
    %73 = arith.mulf %72, %69 : vector<4x16xf32>
    %74 = arith.subf %71, %73 : vector<4x16xf32>
    %75 = arith.addf %55, %74 : vector<4x16xf32>
    %76 = vector.broadcast %63 : vector<1x16xf32> to vector<4x16xf32>
    %77 = arith.mulf %76, %69 : vector<4x16xf32>
    %78 = vector.broadcast %65 : vector<1x16xf32> to vector<4x16xf32>
    %79 = arith.mulf %78, %67 : vector<4x16xf32>
    %80 = arith.addf %77, %79 : vector<4x16xf32>
    %81 = arith.addf %61, %80 : vector<4x16xf32>
    %c0_77 = arith.constant 0 : index
    %c0_78 = arith.constant 0 : index
    %c0_79 = arith.constant 0 : index
    %c0_80 = arith.constant 0 : index
    %c0_81 = arith.constant 0 : index
    %82 = vector.load %arg4[%c0_77, %c0_78, %c0_79, %c0_80, %c0_81] : memref<1x2x2x4x16xf32, #tpu.memory_space<vmem>>, vector<1x1x1x4x16xf32>
    %83 = vector.shape_cast %82 : vector<1x1x1x4x16xf32> to vector<4x16xf32>
    %84 = vector.shape_cast %75 : vector<4x16xf32> to vector<1x1x1x4x16xf32>
    tpu.vector_store %arg4[%c0_77, %c0_78, %c0_79, %c0_80, %c0_81], %84 {strides = array<i32>} : memref<1x2x2x4x16xf32, #tpu.memory_space<vmem>>, vector<1x1x1x4x16xf32>,
    %c0_82 = arith.constant 0 : index
    %c0_83 = arith.constant 0 : index
    %c1_84 = arith.constant 1 : index
    %c0_85 = arith.constant 0 : index
    %c0_86 = arith.constant 0 : index
    %85 = vector.load %arg4[%c0_82, %c0_83, %c1_84, %c0_85, %c0_86] : memref<1x2x2x4x16xf32, #tpu.memory_space<vmem>>, vector<1x1x1x4x16xf32>
    %86 = vector.shape_cast %85 : vector<1x1x1x4x16xf32> to vector<4x16xf32>
    %87 = vector.shape_cast %81 : vector<4x16xf32> to vector<1x1x1x4x16xf32>
    tpu.vector_store %arg4[%c0_82, %c0_83, %c1_84, %c0_85, %c0_86], %87 {strides = array<i32>} : memref<1x2x2x4x16xf32, #tpu.memory_space<vmem>>, vector<1x1x1x4x16xf32>,
    %cst_87 = arith.constant 0.000000e+00 : f32
    %88 = vector.broadcast %cst_87 : f32 to vector<4x16xf32>
    %cst_88 = arith.constant 0.000000e+00 : f32
    %89 = vector.broadcast %cst_88 : f32 to vector<4x16xf32>
    %c0_89 = arith.constant 0 : index
    %c1_90 = arith.constant 1 : index
    %c0_91 = arith.constant 0 : index
    %c0_92 = arith.constant 0 : index
    %c0_93 = arith.constant 0 : index
    %90 = vector.load %arg2[%c0_89, %c1_90, %c0_91, %c0_92, %c0_93] : memref<1x2x2x4x16xf32, #tpu.memory_space<vmem>>, vector<1x1x1x1x16xf32>
    %91 = vector.shape_cast %90 : vector<1x1x1x1x16xf32> to vector<1x16xf32>
    %c0_94 = arith.constant 0 : index
    %c1_95 = arith.constant 1 : index
    %c1_96 = arith.constant 1 : index
    %c0_97 = arith.constant 0 : index
    %c0_98 = arith.constant 0 : index
    %92 = vector.load %arg2[%c0_94, %c1_95, %c1_96, %c0_97, %c0_98] : memref<1x2x2x4x16xf32, #tpu.memory_space<vmem>>, vector<1x1x1x1x16xf32>
    %93 = vector.shape_cast %92 : vector<1x1x1x1x16xf32> to vector<1x16xf32>
    %c0_99 = arith.constant 0 : index
    %c0_100 = arith.constant 0 : index
    %c0_101 = arith.constant 0 : index
    %c0_102 = arith.constant 0 : index
    %c0_103 = arith.constant 0 : index
    %94 = vector.load %arg3[%c0_99, %c0_100, %c0_101, %c0_102, %c0_103] : memref<1x2x4x4x16xf32, #tpu.memory_space<vmem>>, vector<1x1x1x4x16xf32>
    %95 = vector.shape_cast %94 : vector<1x1x1x4x16xf32> to vector<4x16xf32>
    %c0_104 = arith.constant 0 : index
    %c1_105 = arith.constant 1 : index
    %c0_106 = arith.constant 0 : index
    %c0_107 = arith.constant 0 : index
    %c0_108 = arith.constant 0 : index
    %96 = vector.load %arg3[%c0_104, %c1_105, %c0_106, %c0_107, %c0_108] : memref<1x2x4x4x16xf32, #tpu.memory_space<vmem>>, vector<1x1x1x4x16xf32>
    %97 = vector.shape_cast %96 : vector<1x1x1x4x16xf32> to vector<4x16xf32>
    %98 = vector.broadcast %91 : vector<1x16xf32> to vector<4x16xf32>
    %99 = arith.mulf %98, %95 : vector<4x16xf32>
    %100 = vector.broadcast %93 : vector<1x16xf32> to vector<4x16xf32>
    %101 = arith.mulf %100, %97 : vector<4x16xf32>
    %102 = arith.subf %99, %101 : vector<4x16xf32>
    %103 = arith.addf %88, %102 : vector<4x16xf32>
    %104 = vector.broadcast %91 : vector<1x16xf32> to vector<4x16xf32>
    %105 = arith.mulf %104, %97 : vector<4x16xf32>
    %106 = vector.broadcast %93 : vector<1x16xf32> to vector<4x16xf32>
    %107 = arith.mulf %106, %95 : vector<4x16xf32>
    %108 = arith.addf %105, %107 : vector<4x16xf32>
    %109 = arith.addf %89, %108 : vector<4x16xf32>
    %c0_109 = arith.constant 0 : index
    %c1_110 = arith.constant 1 : index
    %c0_111 = arith.constant 0 : index
    %c1_112 = arith.constant 1 : index
    %c0_113 = arith.constant 0 : index
    %110 = vector.load %arg2[%c0_109, %c1_110, %c0_111, %c1_112, %c0_113] : memref<1x2x2x4x16xf32, #tpu.memory_space<vmem>>, vector<1x1x1x1x16xf32>
    %111 = vector.shape_cast %110 : vector<1x1x1x1x16xf32> to vector<1x16xf32>
    %c0_114 = arith.constant 0 : index
    %c1_115 = arith.constant 1 : index
    %c1_116 = arith.constant 1 : index
    %c1_117 = arith.constant 1 : index
    %c0_118 = arith.constant 0 : index
    %112 = vector.load %arg2[%c0_114, %c1_115, %c1_116, %c1_117, %c0_118] : memref<1x2x2x4x16xf32, #tpu.memory_space<vmem>>, vector<1x1x1x1x16xf32>
    %113 = vector.shape_cast %112 : vector<1x1x1x1x16xf32> to vector<1x16xf32>
    %c0_119 = arith.constant 0 : index
    %c0_120 = arith.constant 0 : index
    %c1_121 = arith.constant 1 : index
    %c0_122 = arith.constant 0 : index
    %c0_123 = arith.constant 0 : index
    %114 = vector.load %arg3[%c0_119, %c0_120, %c1_121, %c0_122, %c0_123] : memref<1x2x4x4x16xf32, #tpu.memory_space<vmem>>, vector<1x1x1x4x16xf32>
    %115 = vector.shape_cast %114 : vector<1x1x1x4x16xf32> to vector<4x16xf32>
    %c0_124 = arith.constant 0 : index
    %c1_125 = arith.constant 1 : index
    %c1_126 = arith.constant 1 : index
    %c0_127 = arith.constant 0 : index
    %c0_128 = arith.constant 0 : index
    %116 = vector.load %arg3[%c0_124, %c1_125, %c1_126, %c0_127, %c0_128] : memref<1x2x4x4x16xf32, #tpu.memory_space<vmem>>, vector<1x1x1x4x16xf32>
    %117 = vector.shape_cast %116 : vector<1x1x1x4x16xf32> to vector<4x16xf32>
    %118 = vector.broadcast %111 : vector<1x16xf32> to vector<4x16xf32>
    %119 = arith.mulf %118, %115 : vector<4x16xf32>
    %120 = vector.broadcast %113 : vector<1x16xf32> to vector<4x16xf32>
    %121 = arith.mulf %120, %117 : vector<4x16xf32>
    %122 = arith.subf %119, %121 : vector<4x16xf32>
    %123 = arith.addf %103, %122 : vector<4x16xf32>
    %124 = vector.broadcast %111 : vector<1x16xf32> to vector<4x16xf32>
    %125 = arith.mulf %124, %117 : vector<4x16xf32>
    %126 = vector.broadcast %113 : vector<1x16xf32> to vector<4x16xf32>
    %127 = arith.mulf %126, %115 : vector<4x16xf32>
    %128 = arith.addf %125, %127 : vector<4x16xf32>
    %129 = arith.addf %109, %128 : vector<4x16xf32>
    %c0_129 = arith.constant 0 : index
    %c1_130 = arith.constant 1 : index
    %c0_131 = arith.constant 0 : index
    %c2_132 = arith.constant 2 : index
    %c0_133 = arith.constant 0 : index
    %130 = vector.load %arg2[%c0_129, %c1_130, %c0_131, %c2_132, %c0_133] : memref<1x2x2x4x16xf32, #tpu.memory_space<vmem>>, vector<1x1x1x1x16xf32>
    %131 = vector.shape_cast %130 : vector<1x1x1x1x16xf32> to vector<1x16xf32>
    %c0_134 = arith.constant 0 : index
    %c1_135 = arith.constant 1 : index
    %c1_136 = arith.constant 1 : index
    %c2_137 = arith.constant 2 : index
    %c0_138 = arith.constant 0 : index
    %132 = vector.load %arg2[%c0_134, %c1_135, %c1_136, %c2_137, %c0_138] : memref<1x2x2x4x16xf32, #tpu.memory_space<vmem>>, vector<1x1x1x1x16xf32>
    %133 = vector.shape_cast %132 : vector<1x1x1x1x16xf32> to vector<1x16xf32>
    %c0_139 = arith.constant 0 : index
    %c0_140 = arith.constant 0 : index
    %c2_141 = arith.constant 2 : index
    %c0_142 = arith.constant 0 : index
    %c0_143 = arith.constant 0 : index
    %134 = vector.load %arg3[%c0_139, %c0_140, %c2_141, %c0_142, %c0_143] : memref<1x2x4x4x16xf32, #tpu.memory_space<vmem>>, vector<1x1x1x4x16xf32>
    %135 = vector.shape_cast %134 : vector<1x1x1x4x16xf32> to vector<4x16xf32>
    %c0_144 = arith.constant 0 : index
    %c1_145 = arith.constant 1 : index
    %c2_146 = arith.constant 2 : index
    %c0_147 = arith.constant 0 : index
    %c0_148 = arith.constant 0 : index
    %136 = vector.load %arg3[%c0_144, %c1_145, %c2_146, %c0_147, %c0_148] : memref<1x2x4x4x16xf32, #tpu.memory_space<vmem>>, vector<1x1x1x4x16xf32>
    %137 = vector.shape_cast %136 : vector<1x1x1x4x16xf32> to vector<4x16xf32>
    %138 = vector.broadcast %131 : vector<1x16xf32> to vector<4x16xf32>
    %139 = arith.mulf %138, %135 : vector<4x16xf32>
    %140 = vector.broadcast %133 : vector<1x16xf32> to vector<4x16xf32>
    %141 = arith.mulf %140, %137 : vector<4x16xf32>
    %142 = arith.subf %139, %141 : vector<4x16xf32>
    %143 = arith.addf %123, %142 : vector<4x16xf32>
    %144 = vector.broadcast %131 : vector<1x16xf32> to vector<4x16xf32>
    %145 = arith.mulf %144, %137 : vector<4x16xf32>
    %146 = vector.broadcast %133 : vector<1x16xf32> to vector<4x16xf32>
    %147 = arith.mulf %146, %135 : vector<4x16xf32>
    %148 = arith.addf %145, %147 : vector<4x16xf32>
    %149 = arith.addf %129, %148 : vector<4x16xf32>
    %c0_149 = arith.constant 0 : index
    %c1_150 = arith.constant 1 : index
    %c0_151 = arith.constant 0 : index
    %c3_152 = arith.constant 3 : index
    %c0_153 = arith.constant 0 : index
    %150 = vector.load %arg2[%c0_149, %c1_150, %c0_151, %c3_152, %c0_153] : memref<1x2x2x4x16xf32, #tpu.memory_space<vmem>>, vector<1x1x1x1x16xf32>
    %151 = vector.shape_cast %150 : vector<1x1x1x1x16xf32> to vector<1x16xf32>
    %c0_154 = arith.constant 0 : index
    %c1_155 = arith.constant 1 : index
    %c1_156 = arith.constant 1 : index
    %c3_157 = arith.constant 3 : index
    %c0_158 = arith.constant 0 : index
    %152 = vector.load %arg2[%c0_154, %c1_155, %c1_156, %c3_157, %c0_158] : memref<1x2x2x4x16xf32, #tpu.memory_space<vmem>>, vector<1x1x1x1x16xf32>
    %153 = vector.shape_cast %152 : vector<1x1x1x1x16xf32> to vector<1x16xf32>
    %c0_159 = arith.constant 0 : index
    %c0_160 = arith.constant 0 : index
    %c3_161 = arith.constant 3 : index
    %c0_162 = arith.constant 0 : index
    %c0_163 = arith.constant 0 : index
    %154 = vector.load %arg3[%c0_159, %c0_160, %c3_161, %c0_162, %c0_163] : memref<1x2x4x4x16xf32, #tpu.memory_space<vmem>>, vector<1x1x1x4x16xf32>
    %155 = vector.shape_cast %154 : vector<1x1x1x4x16xf32> to vector<4x16xf32>
    %c0_164 = arith.constant 0 : index
    %c1_165 = arith.constant 1 : index
    %c3_166 = arith.constant 3 : index
    %c0_167 = arith.constant 0 : index
    %c0_168 = arith.constant 0 : index
    %156 = vector.load %arg3[%c0_164, %c1_165, %c3_166, %c0_167, %c0_168] : memref<1x2x4x4x16xf32, #tpu.memory_space<vmem>>, vector<1x1x1x4x16xf32>
    %157 = vector.shape_cast %156 : vector<1x1x1x4x16xf32> to vector<4x16xf32>
    %158 = vector.broadcast %151 : vector<1x16xf32> to vector<4x16xf32>
    %159 = arith.mulf %158, %155 : vector<4x16xf32>
    %160 = vector.broadcast %153 : vector<1x16xf32> to vector<4x16xf32>
    %161 = arith.mulf %160, %157 : vector<4x16xf32>
    %162 = arith.subf %159, %161 : vector<4x16xf32>
    %163 = arith.addf %143, %162 : vector<4x16xf32>
    %164 = vector.broadcast %151 : vector<1x16xf32> to vector<4x16xf32>
    %165 = arith.mulf %164, %157 : vector<4x16xf32>
    %166 = vector.broadcast %153 : vector<1x16xf32> to vector<4x16xf32>
    %167 = arith.mulf %166, %155 : vector<4x16xf32>
    %168 = arith.addf %165, %167 : vector<4x16xf32>
    %169 = arith.addf %149, %168 : vector<4x16xf32>
    %c0_169 = arith.constant 0 : index
    %c1_170 = arith.constant 1 : index
    %c0_171 = arith.constant 0 : index
    %c0_172 = arith.constant 0 : index
    %c0_173 = arith.constant 0 : index
    %170 = vector.load %arg4[%c0_169, %c1_170, %c0_171, %c0_172, %c0_173] : memref<1x2x2x4x16xf32, #tpu.memory_space<vmem>>, vector<1x1x1x4x16xf32>
    %171 = vector.shape_cast %170 : vector<1x1x1x4x16xf32> to vector<4x16xf32>
    %172 = vector.shape_cast %163 : vector<4x16xf32> to vector<1x1x1x4x16xf32>
    tpu.vector_store %arg4[%c0_169, %c1_170, %c0_171, %c0_172, %c0_173], %172 {strides = array<i32>} : memref<1x2x2x4x16xf32, #tpu.memory_space<vmem>>, vector<1x1x1x4x16xf32>,
    %c0_174 = arith.constant 0 : index
    %c1_175 = arith.constant 1 : index
    %c1_176 = arith.constant 1 : index
    %c0_177 = arith.constant 0 : index
    %c0_178 = arith.constant 0 : index
    %173 = vector.load %arg4[%c0_174, %c1_175, %c1_176, %c0_177, %c0_178] : memref<1x2x2x4x16xf32, #tpu.memory_space<vmem>>, vector<1x1x1x4x16xf32>
    %174 = vector.shape_cast %173 : vector<1x1x1x4x16xf32> to vector<4x16xf32>
    %175 = vector.shape_cast %169 : vector<4x16xf32> to vector<1x1x1x4x16xf32>
    tpu.vector_store %arg4[%c0_174, %c1_175, %c1_176, %c0_177, %c0_178], %175 {strides = array<i32>} : memref<1x2x2x4x16xf32, #tpu.memory_space<vmem>>, vector<1x1x1x4x16xf32>,
    return
  }
  func.func @transform_0(%arg0: i32, %arg1: i32) -> (i32, i32, i32, i32, i32) {
    %c0_i32 = arith.constant 0 : i32
    %c0_i32_0 = arith.constant 0 : i32
    %c0_i32_1 = arith.constant 0 : i32
    %c0_i32_2 = arith.constant 0 : i32
    return %arg0, %arg1, %c0_i32, %c0_i32_0, %c0_i32_1 : i32, i32, i32, i32, i32
  }
  func.func @transform_1(%arg0: i32, %arg1: i32) -> (i32, i32, i32, i32, i32) {
    %c0_i32 = arith.constant 0 : i32
    %c0_i32_0 = arith.constant 0 : i32
    %c0_i32_1 = arith.constant 0 : i32
    %c0_i32_2 = arith.constant 0 : i32
    %c0_i32_3 = arith.constant 0 : i32
    return %arg0, %c0_i32, %c0_i32_0, %c0_i32_1, %c0_i32_2 : i32, i32, i32, i32, i32
  }
  func.func @transform_2(%arg0: i32, %arg1: i32) -> (i32, i32, i32, i32, i32) {
    %c0_i32 = arith.constant 0 : i32
    %c0_i32_0 = arith.constant 0 : i32
    %c0_i32_1 = arith.constant 0 : i32
    %c0_i32_2 = arith.constant 0 : i32
    return %arg0, %arg1, %c0_i32, %c0_i32_0, %c0_i32_1 : i32, i32, i32, i32, i32
  }
}

</mosaic_0001>

<llo_original>
// kernel: reverse.0
$region0: #{reverse.0}
  %s0 = inlined_call_operand.vmem [shape: f32[2,4,16,7], index: 0, kind: input, shape index: {}]
  %s1 = inlined_call_operand.vmem [shape: f32[2,4,16,7], index: 1, kind: output, shape index: {}]
  $region1: #{reverse.0} parent=0
    #allocation0 [shape = 'u8[65536]{0}', space=vmem, size = 0x10000, scoped, tag = 'operand span for operand 0']
    #allocation1 [shape = 'u8[32768]{0}', space=vmem, size = 0x8000, scoped, tag = 'operand span for operand 1']
    %s2 = scalar_lea.vmem [#allocation0], 8
    // Predicated region
    $region2: #{reverse.0} parent=1 // pred_check
      _
    $region3: #{reverse.0} parent=1 // pred_check_branch
      %4 = sbr.rel (0) target = $region5
    $region4: #{reverse.0} parent=1 // pred_region
      // Predicated region
      $region6: #{reverse.0} parent=4 // pred_check
        _
      $region7: #{reverse.0} parent=4 // pred_check_branch
        %6 = sbr.rel (0) target = $region9
      $region8: #{reverse.0} parent=4 // pred_region
        // Predicated region
        $region21: #{reverse.0} parent=8 // pred_check
          _
        $region22: #{reverse.0} parent=8 // pred_check_branch
          %36 = sbr.rel (0) target = $region24
        $region23: #{reverse.0} parent=8 // pred_region
          loop: start=0, step=1, limit=1
          $region25: #{reverse.0} parent=23 // loop_pre_header
            _
          $region26: #{reverse.0} parent=23 // loop_header
            %s38 = sphi 0, %s42
            %p39 = scmp.ge.s32.totalorder %s38, 1
            %s43 = sphi %s0, %s0
            %s44 = sphi %s2, %s2
          $region27: #{reverse.0} parent=23 // loop_header_branch
            %41 = sbr.rel (%p39) target = $region31
          $region28: #{reverse.0} parent=23 // loop_body
            %v45 = vld [vmem:[%s43] sm:$0xff]
            %46 = vst [vmem:[%s44] sm:$0xff] %v45
            %v47 = vld [vmem:[%s43 + $0x8] sm:$0xff]
            %48 = vst [vmem:[%s44 + $0x10] sm:$0xff] %v47
            %v49 = vld [vmem:[%s43 + $0x10] sm:$0xff]
            %50 = vst [vmem:[%s44 + $0x20] sm:$0xff] %v49
            %v51 = vld [vmem:[%s43 + $0x18] sm:$0xff]
            %52 = vst [vmem:[%s44 + $0x30] sm:$0xff] %v51
            %v53 = vld [vmem:[%s43 + $0x20] sm:$0xff]
            %54 = vst [vmem:[%s44 + $0x40] sm:$0xff] %v53
            %v55 = vld [vmem:[%s43 + $0x28] sm:$0xff]
            %56 = vst [vmem:[%s44 + $0x50] sm:$0xff] %v55
            %v57 = vld [vmem:[%s43 + $0x30] sm:$0xff]
            %58 = vst [vmem:[%s44 + $0x60] sm:$0xff] %v57
            %v59 = vld [vmem:[%s43 + $0x38] sm:$0xff]
            %60 = vst [vmem:[%s44 + $0x70] sm:$0xff] %v59
          $region29: #{reverse.0} parent=23 // loop_footer
            %s42 = sadd.s32 1, %s38
          $region30: #{reverse.0} parent=23 // loop_footer_branch
            %37 = sbr.rel target = $region26
          $region31: #{reverse.0} parent=23 // loop_exit
            _
        $region24: #{reverse.0} parent=8 // pred_fallthru
          _
        // Predicated region
        $region32: #{reverse.0} parent=8 // pred_check
          _
        $region33: #{reverse.0} parent=8 // pred_check_branch
          %62 = sbr.rel target = $region35
        $region34: #{reverse.0} parent=8 // pred_region
          _
        $region35: #{reverse.0} parent=8 // pred_fallthru
          _
      $region9: #{reverse.0} parent=4 // pred_fallthru
        _
      // Predicated region
      $region10: #{reverse.0} parent=4 // pred_check
        _
      $region11: #{reverse.0} parent=4 // pred_check_branch
        %8 = sbr.rel target = $region13
      $region12: #{reverse.0} parent=4 // pred_region
        %s10 = ssub.s32 256, 1
        loop: start=0, step=1, limit=1
        $region14: #{reverse.0} parent=12 // loop_pre_header
          _
        $region15: #{reverse.0} parent=12 // loop_header
          %s12 = sphi 0, %s16
          %p13 = scmp.ge.s32.totalorder %s12, 1
          %s17 = sphi %s0, %s0
          %s18 = sphi %s2, %s2
        $region16: #{reverse.0} parent=12 // loop_header_branch
          %15 = sbr.rel (%p13) target = $region20
        $region17: #{reverse.0} parent=12 // loop_body
          %v19 = vld [vmem:[%s17] sm:%s10]
          %20 = vst [vmem:[%s18] sm:%s10] %v19
          %v21 = vld [vmem:[%s17 + $0x8] sm:%s10]
          %22 = vst [vmem:[%s18 + $0x10] sm:%s10] %v21
          %v23 = vld [vmem:[%s17 + $0x10] sm:%s10]
          %24 = vst [vmem:[%s18 + $0x20] sm:%s10] %v23
          %v25 = vld [vmem:[%s17 + $0x18] sm:%s10]
          %26 = vst [vmem:[%s18 + $0x30] sm:%s10] %v25
          %v27 = vld [vmem:[%s17 + $0x20] sm:%s10]
          %28 = vst [vmem:[%s18 + $0x40] sm:%s10] %v27
          %v29 = vld [vmem:[%s17 + $0x28] sm:%s10]
          %30 = vst [vmem:[%s18 + $0x50] sm:%s10] %v29
          %v31 = vld [vmem:[%s17 + $0x30] sm:%s10]
          %32 = vst [vmem:[%s18 + $0x60] sm:%s10] %v31
          %v33 = vld [vmem:[%s17 + $0x38] sm:%s10]
          %34 = vst [vmem:[%s18 + $0x70] sm:%s10] %v33
        $region18: #{reverse.0} parent=12 // loop_footer
          %s16 = sadd.s32 1, %s12
        $region19: #{reverse.0} parent=12 // loop_footer_branch
          %11 = sbr.rel target = $region15
        $region20: #{reverse.0} parent=12 // loop_exit
          _
      $region13: #{reverse.0} parent=4 // pred_fallthru
        _
    $region5: #{reverse.0} parent=1 // pred_fallthru
      _
    %63 = vnop
    %s64 = scalar_lea.vmem [#allocation0], 7
    %v65 = vld [vmem:[%s64] ss:$-1 sm:$0xff]
    %v66 = vrot.slane %v65, 1
    %67 = vst [vmem:[#allocation1] sm:$0xff] %v66
    %s68 = scalar_lea.vmem [#allocation0], 8
    %s69 = scalar_lea.vmem %s68, 7 [#allocation0]
    %v70 = vld [vmem:[%s69] ss:$-1 sm:$0xff]
    %v71 = vrot.slane %v70, 1
    %v72 = vlaneseq
    %v73 = vshrl.u32 %v72, 7
    %vm74 = vcmp.lt.s32.totalorder %v73, 7
    %75 = vst.msk [vmem:[#allocation1] sm:$0xff] %vm74, %v71
    %s76 = scalar_lea.vmem [#allocation1], 8
    %s77 = scalar_lea.vmem [#allocation0], 16
    %s78 = scalar_lea.vmem %s77, 7 [#allocation0]
    %v79 = vld [vmem:[%s78] ss:$-1 sm:$0xff]
    %v80 = vrot.slane %v79, 1
    %81 = vst [vmem:[%s76] sm:$0xff] %v80
    %s82 = scalar_lea.vmem %s77, 8 [#allocation0]
    %s83 = scalar_lea.vmem %s82, 7 [#allocation0]
    %v84 = vld [vmem:[%s83] ss:$-1 sm:$0xff]
    %v85 = vrot.slane %v84, 1
    %v86 = vlaneseq
    %v87 = vshrl.u32 %v86, 7
    %vm88 = vcmp.lt.s32.totalorder %v87, 7
    %89 = vst.msk [vmem:[%s76] sm:$0xff] %vm88, %v85
    %s90 = scalar_lea.vmem [#allocation1], 16
    %s91 = scalar_lea.vmem [#allocation0], 32
    %s92 = scalar_lea.vmem %s91, 7 [#allocation0]
    %v93 = vld [vmem:[%s92] ss:$-1 sm:$0xff]
    %v94 = vrot.slane %v93, 1
    %95 = vst [vmem:[%s90] sm:$0xff] %v94
    %s96 = scalar_lea.vmem %s91, 8 [#allocation0]
    %s97 = scalar_lea.vmem %s96, 7 [#allocation0]
    %v98 = vld [vmem:[%s97] ss:$-1 sm:$0xff]
    %v99 = vrot.slane %v98, 1
    %v100 = vlaneseq
    %v101 = vshrl.u32 %v100, 7
    %vm102 = vcmp.lt.s32.totalorder %v101, 7
    %103 = vst.msk [vmem:[%s90] sm:$0xff] %vm102, %v99
    %s104 = scalar_lea.vmem [#allocation1], 24
    %s105 = scalar_lea.vmem [#allocation0], 48
    %s106 = scalar_lea.vmem %s105, 7 [#allocation0]
    %v107 = vld [vmem:[%s106] ss:$-1 sm:$0xff]
    %v108 = vrot.slane %v107, 1
    %109 = vst [vmem:[%s104] sm:$0xff] %v108
    %s110 = scalar_lea.vmem %s105, 8 [#allocation0]
    %s111 = scalar_lea.vmem %s110, 7 [#allocation0]
    %v112 = vld [vmem:[%s111] ss:$-1 sm:$0xff]
    %v113 = vrot.slane %v112, 1
    %v114 = vlaneseq
    %v115 = vshrl.u32 %v114, 7
    %vm116 = vcmp.lt.s32.totalorder %v115, 7
    %117 = vst.msk [vmem:[%s104] sm:$0xff] %vm116, %v113
    %s118 = scalar_lea.vmem [#allocation1], 32
    %s119 = scalar_lea.vmem [#allocation0], 64
    %s120 = scalar_lea.vmem %s119, 7 [#allocation0]
    %v121 = vld [vmem:[%s120] ss:$-1 sm:$0xff]
    %v122 = vrot.slane %v121, 1
    %123 = vst [vmem:[%s118] sm:$0xff] %v122
    %s124 = scalar_lea.vmem %s119, 8 [#allocation0]
    %s125 = scalar_lea.vmem %s124, 7 [#allocation0]
    %v126 = vld [vmem:[%s125] ss:$-1 sm:$0xff]
    %v127 = vrot.slane %v126, 1
    %v128 = vlaneseq
    %v129 = vshrl.u32 %v128, 7
    %vm130 = vcmp.lt.s32.totalorder %v129, 7
    %131 = vst.msk [vmem:[%s118] sm:$0xff] %vm130, %v127
    %s132 = scalar_lea.vmem [#allocation1], 40
    %s133 = scalar_lea.vmem [#allocation0], 80
    %s134 = scalar_lea.vmem %s133, 7 [#allocation0]
    %v135 = vld [vmem:[%s134] ss:$-1 sm:$0xff]
    %v136 = vrot.slane %v135, 1
    %137 = vst [vmem:[%s132] sm:$0xff] %v136
    %s138 = scalar_lea.vmem %s133, 8 [#allocation0]
    %s139 = scalar_lea.vmem %s138, 7 [#allocation0]
    %v140 = vld [vmem:[%s139] ss:$-1 sm:$0xff]
    %v141 = vrot.slane %v140, 1
    %v142 = vlaneseq
    %v143 = vshrl.u32 %v142, 7
    %vm144 = vcmp.lt.s32.totalorder %v143, 7
    %145 = vst.msk [vmem:[%s132] sm:$0xff] %vm144, %v141
    %s146 = scalar_lea.vmem [#allocation1], 48
    %s147 = scalar_lea.vmem [#allocation0], 96
    %s148 = scalar_lea.vmem %s147, 7 [#allocation0]
    %v149 = vld [vmem:[%s148] ss:$-1 sm:$0xff]
    %v150 = vrot.slane %v149, 1
    %151 = vst [vmem:[%s146] sm:$0xff] %v150
    %s152 = scalar_lea.vmem %s147, 8 [#allocation0]
    %s153 = scalar_lea.vmem %s152, 7 [#allocation0]
    %v154 = vld [vmem:[%s153] ss:$-1 sm:$0xff]
    %v155 = vrot.slane %v154, 1
    %v156 = vlaneseq
    %v157 = vshrl.u32 %v156, 7
    %vm158 = vcmp.lt.s32.totalorder %v157, 7
    %159 = vst.msk [vmem:[%s146] sm:$0xff] %vm158, %v155
    %s160 = scalar_lea.vmem [#allocation1], 56
    %s161 = scalar_lea.vmem [#allocation0], 112
    %s162 = scalar_lea.vmem %s161, 7 [#allocation0]
    %v163 = vld [vmem:[%s162] ss:$-1 sm:$0xff]
    %v164 = vrot.slane %v163, 1
    %165 = vst [vmem:[%s160] sm:$0xff] %v164
    %s166 = scalar_lea.vmem %s161, 8 [#allocation0]
    %s167 = scalar_lea.vmem %s166, 7 [#allocation0]
    %v168 = vld [vmem:[%s167] ss:$-1 sm:$0xff]
    %v169 = vrot.slane %v168, 1
    %v170 = vlaneseq
    %v171 = vshrl.u32 %v170, 7
    %vm172 = vcmp.lt.s32.totalorder %v171, 7
    %173 = vst.msk [vmem:[%s160] sm:$0xff] %vm172, %v169
    // Predicated region
    $region36: #{reverse.0} parent=1 // pred_check
      _
    $region37: #{reverse.0} parent=1 // pred_check_branch
      %175 = sbr.rel (0) target = $region39
    $region38: #{reverse.0} parent=1 // pred_region
      // Predicated region
      $region40: #{reverse.0} parent=38 // pred_check
        _
      $region41: #{reverse.0} parent=38 // pred_check_branch
        %177 = sbr.rel (0) target = $region43
      $region42: #{reverse.0} parent=38 // pred_region
        // Predicated region
        $region55: #{reverse.0} parent=42 // pred_check
          _
        $region56: #{reverse.0} parent=42 // pred_check_branch
          %207 = sbr.rel (0) target = $region58
        $region57: #{reverse.0} parent=42 // pred_region
          loop: start=0, step=1, limit=1
          $region59: #{reverse.0} parent=57 // loop_pre_header
            _
          $region60: #{reverse.0} parent=57 // loop_header
            %s209 = sphi 0, %s213
            %p210 = scmp.ge.s32.totalorder %s209, 1
            %s214 = sphi [#allocation1], [#allocation1]
            %s215 = sphi %s1, %s1
          $region61: #{reverse.0} parent=57 // loop_header_branch
            %212 = sbr.rel (%p210) target = $region65
          $region62: #{reverse.0} parent=57 // loop_body
            %v216 = vld [vmem:[%s214] sm:$0xff]
            %217 = vst [vmem:[%s215] sm:$0xff] %v216
            %v218 = vld [vmem:[%s214 + $0x8] sm:$0xff]
            %219 = vst [vmem:[%s215 + $0x8] sm:$0xff] %v218
            %v220 = vld [vmem:[%s214 + $0x10] sm:$0xff]
            %221 = vst [vmem:[%s215 + $0x10] sm:$0xff] %v220
            %v222 = vld [vmem:[%s214 + $0x18] sm:$0xff]
            %223 = vst [vmem:[%s215 + $0x18] sm:$0xff] %v222
            %v224 = vld [vmem:[%s214 + $0x20] sm:$0xff]
            %225 = vst [vmem:[%s215 + $0x20] sm:$0xff] %v224
            %v226 = vld [vmem:[%s214 + $0x28] sm:$0xff]
            %227 = vst [vmem:[%s215 + $0x28] sm:$0xff] %v226
            %v228 = vld [vmem:[%s214 + $0x30] sm:$0xff]
            %229 = vst [vmem:[%s215 + $0x30] sm:$0xff] %v228
            %v230 = vld [vmem:[%s214 + $0x38] sm:$0xff]
            %231 = vst [vmem:[%s215 + $0x38] sm:$0xff] %v230
          $region63: #{reverse.0} parent=57 // loop_footer
            %s213 = sadd.s32 1, %s209
          $region64: #{reverse.0} parent=57 // loop_footer_branch
            %208 = sbr.rel target = $region60
          $region65: #{reverse.0} parent=57 // loop_exit
            _
        $region58: #{reverse.0} parent=42 // pred_fallthru
          _
        // Predicated region
        $region66: #{reverse.0} parent=42 // pred_check
          _
        $region67: #{reverse.0} parent=42 // pred_check_branch
          %233 = sbr.rel target = $region69
        $region68: #{reverse.0} parent=42 // pred_region
          _
        $region69: #{reverse.0} parent=42 // pred_fallthru
          _
      $region43: #{reverse.0} parent=38 // pred_fallthru
        _
      // Predicated region
      $region44: #{reverse.0} parent=38 // pred_check
        _
      $region45: #{reverse.0} parent=38 // pred_check_branch
        %179 = sbr.rel target = $region47
      $region46: #{reverse.0} parent=38 // pred_region
        %s181 = ssub.s32 256, 1
        loop: start=0, step=1, limit=1
        $region48: #{reverse.0} parent=46 // loop_pre_header
          _
        $region49: #{reverse.0} parent=46 // loop_header
          %s183 = sphi 0, %s187
          %p184 = scmp.ge.s32.totalorder %s183, 1
          %s188 = sphi [#allocation1], [#allocation1]
          %s189 = sphi %s1, %s1
        $region50: #{reverse.0} parent=46 // loop_header_branch
          %186 = sbr.rel (%p184) target = $region54
        $region51: #{reverse.0} parent=46 // loop_body
          %v190 = vld [vmem:[%s188] sm:%s181]
          %191 = vst [vmem:[%s189] sm:%s181] %v190
          %v192 = vld [vmem:[%s188 + $0x8] sm:%s181]
          %193 = vst [vmem:[%s189 + $0x8] sm:%s181] %v192
          %v194 = vld [vmem:[%s188 + $0x10] sm:%s181]
          %195 = vst [vmem:[%s189 + $0x10] sm:%s181] %v194
          %v196 = vld [vmem:[%s188 + $0x18] sm:%s181]
          %197 = vst [vmem:[%s189 + $0x18] sm:%s181] %v196
          %v198 = vld [vmem:[%s188 + $0x20] sm:%s181]
          %199 = vst [vmem:[%s189 + $0x20] sm:%s181] %v198
          %v200 = vld [vmem:[%s188 + $0x28] sm:%s181]
          %201 = vst [vmem:[%s189 + $0x28] sm:%s181] %v200
          %v202 = vld [vmem:[%s188 + $0x30] sm:%s181]
          %203 = vst [vmem:[%s189 + $0x30] sm:%s181] %v202
          %v204 = vld [vmem:[%s188 + $0x38] sm:%s181]
          %205 = vst [vmem:[%s189 + $0x38] sm:%s181] %v204
        $region52: #{reverse.0} parent=46 // loop_footer
          %s187 = sadd.s32 1, %s183
        $region53: #{reverse.0} parent=46 // loop_footer_branch
          %182 = sbr.rel target = $region49
        $region54: #{reverse.0} parent=46 // loop_exit
          _
      $region47: #{reverse.0} parent=38 // pred_fallthru
        _
    $region39: #{reverse.0} parent=1 // pred_fallthru
      _
    %234 = vnop

// kernel: spectral_conv2d_forward.1
$region0: #{spectral_conv2d_forward.1}
  #allocation0 [shape = 'u32[]', space=smem, size = 0x4, offset = 0x4, fixed_abs, tag = 'smem constant byte address 0x4 - core index']
  #allocation1 [shape = 'u32[72,128]{1,0:T(1,128)}', space=vmem, size = 0x9000, scoped, tag = 'internal scratch']
  %s0 = inlined_call_operand.vmem [shape: f32[2,2,2,4,16], index: 0, kind: input, shape index: {}]
  %s1 = inlined_call_operand.vmem [shape: f32[2,2,4,4,16], index: 1, kind: input, shape index: {}]
  %s2 = inlined_call_operand.vmem [shape: f32[2,2,2,4,16], index: 2, kind: output, shape index: {}]
  %s3 = sld [smem:[#allocation0]]
  $region41: #{spectral_conv2d_forward.1} parent=0
    _
  %s5 = ssub.s32 1, %s3
  %s6 = scalar_select 0, %s5, %s3
  loop: start=0, step=1, limit=4
  $region2: #{spectral_conv2d_forward.1} parent=0 // loop_pre_header
    _
  $region3: #{spectral_conv2d_forward.1} parent=0 // loop_header
    %s8 = sphi 0, %s12
    %p9 = scmp.ge.s32.totalorder %s8, 4
    %s15 = sphi 0, %s27
    %s16 = sphi 0, %s23
    %s17 = sphi 0, %s15
    %s18 = sphi 0, %s16
    %s19 = sphi 0, %s17
    %s20 = sphi 0, %s18
    %s32 = sphi 0, %s34
    %s35 = sphi 0, %s32
    %s36 = sphi 0, %s35
    %s52 = sphi 0, %s36
    %s58 = sphi 0, %s60
    %s61 = sphi 0, %s58
    %s62 = sphi 0, %s61
    %s78 = sphi 0, %s62
    %s86 = sphi 0, %s88
    %s89 = sphi 0, %s86
    %s90 = sphi 0, %s89
    %s106 = sphi 0, %s90
  $region4: #{spectral_conv2d_forward.1} parent=0 // loop_header_branch
    %11 = sbr.rel (%p9) target = $region8
  $region5: #{spectral_conv2d_forward.1} parent=0 // loop_body
    %s13 = ssub.s32 %s8, 1
    %s14 = ssub.s32 %s8, 2
    %s21 = sadd.s32 1, %s16
    %p22 = scmp.ge.s32.totalorder %s21, 1
    %s23 = scalar_select %p22, 0, %s21
    %s24 = sadd.s32 1, %s15
    %s25 = scalar_select %p22, %s24, %s15
    %p26 = scmp.ge.s32.totalorder %s25, 2
    %s27 = scalar_select %p26, 0, %s25
    %s28 = ssub.s32 %s15, %s27
    %s29 = ssub.s32 %s16, %s23
    %s30 = sor.u32 %s28, %s29
    %p31 = scmp.eq.s32.totalorder %s30, 0
    %s33 = sadd.s32 %s32, 1
    %s34 = scalar_select %p31, %s32, %s33
    %p37 = pneg %p31
    %p38 = scmp.eq.s32.totalorder %s8, 1
    %p39 = por %p37, %p38
    %p40 = scmp.ne.s32.totalorder %s32, %s35
    %p41 = scmp.eq.s32.totalorder %s8, 0
    %p42 = por %p40, %p41
    %p43 = scmp.ne.s32.totalorder %s32, %s35
    %p44 = scmp.eq.s32.totalorder %s13, 1
    %p45 = por %p43, %p44
    %p46 = scmp.ne.s32.totalorder %s35, %s36
    %p47 = scmp.eq.s32.totalorder %s13, 0
    %p48 = por %p46, %p47
    %p49 = scmp.ne.s32.totalorder %s35, %s36
    %p50 = scmp.eq.s32.totalorder %s14, 1
    %p51 = por %p49, %p50
    %p53 = scmp.ne.s32.totalorder %s36, %s52
    %p54 = scmp.eq.s32.totalorder %s14, 0
    %p55 = por %p53, %p54
    %s56 = ssub.s32 %s15, %s27
    %p57 = scmp.eq.s32.totalorder %s56, 0
    %s59 = sadd.s32 %s58, 1
    %s60 = scalar_select %p57, %s58, %s59
    %p63 = pneg %p57
    %p64 = scmp.eq.s32.totalorder %s8, 1
    %p65 = por %p63, %p64
    %p66 = scmp.ne.s32.totalorder %s58, %s61
    %p67 = scmp.eq.s32.totalorder %s8, 0
    %p68 = por %p66, %p67
    %p69 = scmp.ne.s32.totalorder %s58, %s61
    %p70 = scmp.eq.s32.totalorder %s13, 1
    %p71 = por %p69, %p70
    %p72 = scmp.ne.s32.totalorder %s61, %s62
    %p73 = scmp.eq.s32.totalorder %s13, 0
    %p74 = por %p72, %p73
    %p75 = scmp.ne.s32.totalorder %s61, %s62
    %p76 = scmp.eq.s32.totalorder %s14, 1
    %p77 = por %p75, %p76
    %p79 = scmp.ne.s32.totalorder %s62, %s78
    %p80 = scmp.eq.s32.totalorder %s14, 0
    %p81 = por %p79, %p80
    %s82 = ssub.s32 %s15, %s27
    %s83 = ssub.s32 %s16, %s23
    %s84 = sor.u32 %s82, %s83
    %p85 = scmp.eq.s32.totalorder %s84, 0
    %s87 = sadd.s32 %s86, 1
    %s88 = scalar_select %p85, %s86, %s87
    %p91 = pneg %p85
    %p92 = scmp.eq.s32.totalorder %s8, 1
    %p93 = por %p91, %p92
    %p94 = scmp.ne.s32.totalorder %s86, %s89
    %p95 = scmp.eq.s32.totalorder %s8, 0
    %p96 = por %p94, %p95
    %p97 = scmp.ne.s32.totalorder %s86, %s89
    %p98 = scmp.eq.s32.totalorder %s13, 1
    %p99 = por %p97, %p98
    %p100 = scmp.ne.s32.totalorder %s89, %s90
    %p101 = scmp.eq.s32.totalorder %s13, 0
    %p102 = por %p100, %p101
    %p103 = scmp.ne.s32.totalorder %s89, %s90
    %p104 = scmp.eq.s32.totalorder %s14, 1
    %p105 = por %p103, %p104
    %p107 = scmp.ne.s32.totalorder %s90, %s106
    %p108 = scmp.eq.s32.totalorder %s14, 0
    %p109 = por %p107, %p108
    %p110 = scmp.le.s32.totalorder 1, %s8
    %p111 = scmp.lt.s32.totalorder %s8, 3
    %p112 = pnand %p110, %p111
    %p113 = pneg %p112
    // Predicated region
    $region9: #{spectral_conv2d_forward.1} parent=5 // pred_check
      _
    $region10: #{spectral_conv2d_forward.1} parent=5 // pred_check_branch
      %115 = sbr.rel (%p112) target = $region12
    $region11: #{spectral_conv2d_forward.1} parent=5 // pred_region
      %s116 = ssub.s32 %s8, 1
    $region12: #{spectral_conv2d_forward.1} parent=5 // pred_fallthru
      _
    %p117 = scmp.lt.s32.totalorder %s8, 2
    // Predicated region
    $region13: #{spectral_conv2d_forward.1} parent=5 // pred_check
      %p118 = pneg %p117
    $region14: #{spectral_conv2d_forward.1} parent=5 // pred_check_branch
      %120 = sbr.rel (%p118) target = $region16
    $region15: #{spectral_conv2d_forward.1} parent=5 // pred_region
      // Predicated region
      $region17: #{spectral_conv2d_forward.1} parent=15 // pred_check
        %p121 = pneg %p42
      $region18: #{spectral_conv2d_forward.1} parent=15 // pred_check_branch
        %123 = sbr.rel (%p121) target = $region20
      $region19: #{spectral_conv2d_forward.1} parent=15 // pred_region
        %s124 = smul.u32 2, %s16
        %p125 = scmp.lt.s32.totalorder %s15, 1
        %s126 = scalar_select %p125, %s15, 1
        %p127 = scmp.lt.s32.totalorder %s124, 1
        %s128 = scalar_select %p127, %s124, 1
        %s129 = smul.addr %s128, 2
        %s130 = smul.addr %s126, 4
        %s131 = sadd.s32 %s129, %s130
        %s132 = smul.addr %s131, 4
        %s133 = scalar_lea.vmem %s0, %s132
        %s134 = smul.u32 2, %s16
      $region20: #{spectral_conv2d_forward.1} parent=15 // pred_fallthru
        _
      // Predicated region
      $region21: #{spectral_conv2d_forward.1} parent=15 // pred_check
        %p135 = pneg %p68
      $region22: #{spectral_conv2d_forward.1} parent=15 // pred_check_branch
        %137 = sbr.rel (%p135) target = $region24
      $region23: #{spectral_conv2d_forward.1} parent=15 // pred_region
        %p138 = scmp.lt.s32.totalorder %s15, 1
        %s139 = scalar_select %p138, %s15, 1
        %s140 = smul.addr %s139, 8
        %s141 = smul.addr %s140, 4
        %s142 = scalar_lea.vmem %s1, %s141
      $region24: #{spectral_conv2d_forward.1} parent=15 // pred_fallthru
        _
    $region16: #{spectral_conv2d_forward.1} parent=5 // pred_fallthru
      _
    %p143 = scmp.le.s32.totalorder 1, %s8
    %p144 = scmp.lt.s32.totalorder %s8, 3
    %p145 = pnand %p143, %p144
    %p146 = pneg %p145
    // Predicated region
    $region25: #{spectral_conv2d_forward.1} parent=5 // pred_check
      _
    $region26: #{spectral_conv2d_forward.1} parent=5 // pred_check_branch
      %148 = sbr.rel (%p145) target = $region28
    $region27: #{spectral_conv2d_forward.1} parent=5 // pred_region
      %s149 = ssub.s32 %s8, 1
      %s150 = smul.u32 2, %s18
      %p151 = scmp.lt.s32.totalorder %s17, 1
      %s152 = scalar_select %p151, %s17, 1
      %p153 = scmp.lt.s32.totalorder %s150, 1
      %s154 = scalar_select %p153, %s150, 1
      %s155 = smul.addr %s154, 2
      %s156 = smul.addr %s152, 4
      %s157 = sadd.s32 %s155, %s156
      %s158 = smul.addr %s157, 4
      %s159 = scalar_lea.vmem %s0, %s158
      %p160 = pneg %p48
      %p161 = pneg %p45
      %p162 = scmp.lt.s32.totalorder %s17, 1
      %s163 = scalar_select %p162, %s17, 1
      %s164 = smul.addr %s163, 8
      %s165 = smul.addr %s164, 4
      %s166 = scalar_lea.vmem %s1, %s165
      %p167 = pneg %p74
      %p168 = pneg %p71
      %p169 = pneg %p102
      %p170 = pneg %p99
      %s171 = smul.u32 2, %s18
      %p172 = scmp.lt.s32.totalorder %s17, 1
      %s173 = scalar_select %p172, %s17, 1
      %p174 = scmp.lt.s32.totalorder %s171, 1
      %s175 = scalar_select %p174, %s171, 1
      %s176 = smul.addr %s175, 2
      %s177 = smul.addr %s173, 4
      %s178 = sadd.s32 %s176, %s177
      %s179 = smul.addr %s178, 4
      %s180 = scalar_lea.vmem %s2, %s179
      %s181 = smul.u32 2, %s18
      %p182 = scmp.lt.s32.totalorder %s17, 1
      %s183 = scalar_select %p182, %s17, 1
      %p184 = scmp.lt.s32.totalorder %s181, 1
      %s185 = scalar_select %p184, %s181, 1
      %s186 = smul.addr %s185, 2
      %s187 = smul.addr %s183, 4
      %s188 = sadd.s32 %s186, %s187
      %s189 = smul.addr %s188, 4
      %s190 = scalar_lea.vmem %s0, %s189
      %s191 = smul.u32 2, %s18
      %p192 = scmp.lt.s32.totalorder %s17, 1
      %s193 = scalar_select %p192, %s17, 1
      %s194 = smul.addr %s193, 8
      %s195 = smul.addr %s194, 4
      %s196 = scalar_lea.vmem %s1, %s195
      %s197 = smul.u32 2, %s18
      %p198 = scmp.lt.s32.totalorder %s17, 1
      %s199 = scalar_select %p198, %s17, 1
      %p200 = scmp.lt.s32.totalorder %s197, 1
      %s201 = scalar_select %p200, %s197, 1
      %s202 = smul.addr %s201, 2
      %s203 = smul.addr %s199, 4
      %s204 = sadd.s32 %s202, %s203
      %s205 = smul.addr %s204, 4
      %s206 = scalar_lea.vmem %s2, %s205
      %s207 = smul.u32 2, %s18
      %v208 = vld [vmem:[%s190] sm:$0x1]
      %s209 = scalar_lea.vmem %s190, 4
      %v210 = vld [vmem:[%s209] sm:$0x1]
      %v211 = vld [vmem:[%s196] sm:$0xf]
      %s212 = scalar_lea.vmem %s196, 16
      %v213 = vld [vmem:[%s212] sm:$0xf]
      %v214 = vperm.slane %v208, 0
      %v215 = vmul.f32 %v214, %v211
      %v216 = vperm.slane %v210, 0
      %v217 = vmul.f32 %v216, %v213
      %v218 = vsub.f32 %v215, %v217
      %v219 = vadd.f32 %v218, 0.0
      %v220 = vmul.f32 %v214, %v213
      %v221 = vmul.f32 %v216, %v211
      %v222 = vadd.f32 %v220, %v221
      %v223 = vadd.f32 %v222, 0.0
      %v224 = vld [vmem:[%s190 + $0x1] sm:$0x1]
      %v225 = vld [vmem:[%s209 + $0x1] sm:$0x1]
      %s226 = scalar_lea.vmem %s196, 4
      %v227 = vld [vmem:[%s226] sm:$0xf]
      %s228 = scalar_lea.vmem %s196, 20
      %v229 = vld [vmem:[%s228] sm:$0xf]
      %v230 = vperm.slane %v224, 0
      %v231 = vmul.f32 %v230, %v227
      %v232 = vperm.slane %v225, 0
      %v233 = vmul.f32 %v232, %v229
      %v234 = vsub.f32 %v231, %v233
      %v235 = vadd.f32 %v219, %v234
      %v236 = vmul.f32 %v230, %v229
      %v237 = vmul.f32 %v232, %v227
      %v238 = vadd.f32 %v236, %v237
      %v239 = vadd.f32 %v223, %v238
      %v240 = vld [vmem:[%s190 + $0x2] sm:$0x1]
      %v241 = vld [vmem:[%s209 + $0x2] sm:$0x1]
      %s242 = scalar_lea.vmem %s196, 8
      %v243 = vld [vmem:[%s242] sm:$0xf]
      %s244 = scalar_lea.vmem %s196, 24
      %v245 = vld [vmem:[%s244] sm:$0xf]
      %v246 = vperm.slane %v240, 0
      %v247 = vmul.f32 %v246, %v243
      %v248 = vperm.slane %v241, 0
      %v249 = vmul.f32 %v248, %v245
      %v250 = vsub.f32 %v247, %v249
      %v251 = vadd.f32 %v235, %v250
      %v252 = vmul.f32 %v246, %v245
      %v253 = vmul.f32 %v248, %v243
      %v254 = vadd.f32 %v252, %v253
      %v255 = vadd.f32 %v239, %v254
      %v256 = vld [vmem:[%s190 + $0x3] sm:$0x1]
      %v257 = vld [vmem:[%s209 + $0x3] sm:$0x1]
      %s258 = scalar_lea.vmem %s196, 12
      %v259 = vld [vmem:[%s258] sm:$0xf]
      %s260 = scalar_lea.vmem %s196, 28
      %v261 = vld [vmem:[%s260] sm:$0xf]
      %v262 = vperm.slane %v256, 0
      %v263 = vmul.f32 %v262, %v259
      %v264 = vperm.slane %v257, 0
      %v265 = vmul.f32 %v264, %v261
      %v266 = vsub.f32 %v263, %v265
      %v267 = vadd.f32 %v251, %v266
      %v268 = vmul.f32 %v262, %v261
      %v269 = vmul.f32 %v264, %v259
      %v270 = vadd.f32 %v268, %v269
      %v271 = vadd.f32 %v255, %v270
      %vm272 = vcmask 125952
      %273 = vst.msk [vmem:[%s206] sm:$0xf] %vm272, %v267
      %s274 = scalar_lea.vmem %s206, 4
      %275 = vst.msk [vmem:[%s274] sm:$0xf] %vm272, %v271
      %s276 = scalar_lea.vmem %s190, 8
      %v277 = vld [vmem:[%s276] sm:$0x1]
      %s278 = scalar_lea.vmem %s190, 12
      %v279 = vld [vmem:[%s278] sm:$0x1]
      %v280 = vld [vmem:[%s196] sm:$0xf]
      %v281 = vld [vmem:[%s212] sm:$0xf]
      %v282 = vperm.slane %v277, 0
      %v283 = vmul.f32 %v282, %v280
      %v284 = vperm.slane %v279, 0
      %v285 = vmul.f32 %v284, %v281
      %v286 = vsub.f32 %v283, %v285
      %v287 = vadd.f32 %v286, 0.0
      %v288 = vmul.f32 %v282, %v281
      %v289 = vmul.f32 %v284, %v280
      %v290 = vadd.f32 %v288, %v289
      %v291 = vadd.f32 %v290, 0.0
      %v292 = vld [vmem:[%s276 + $0x1] sm:$0x1]
      %v293 = vld [vmem:[%s278 + $0x1] sm:$0x1]
      %v294 = vld [vmem:[%s226] sm:$0xf]
      %v295 = vld [vmem:[%s228] sm:$0xf]
      %v296 = vperm.slane %v292, 0
      %v297 = vmul.f32 %v296, %v294
      %v298 = vperm.slane %v293, 0
      %v299 = vmul.f32 %v298, %v295
      %v300 = vsub.f32 %v297, %v299
      %v301 = vadd.f32 %v287, %v300
      %v302 = vmul.f32 %v296, %v295
      %v303 = vmul.f32 %v298, %v294
      %v304 = vadd.f32 %v302, %v303
      %v305 = vadd.f32 %v291, %v304
      %v306 = vld [vmem:[%s276 + $0x2] sm:$0x1]
      %v307 = vld [vmem:[%s278 + $0x2] sm:$0x1]
      %v308 = vld [vmem:[%s242] sm:$0xf]
      %v309 = vld [vmem:[%s244] sm:$0xf]
      %v310 = vperm.slane %v306, 0
      %v311 = vmul.f32 %v310, %v308
      %v312 = vperm.slane %v307, 0
      %v313 = vmul.f32 %v312, %v309
      %v314 = vsub.f32 %v311, %v313
      %v315 = vadd.f32 %v301, %v314
      %v316 = vmul.f32 %v310, %v309
      %v317 = vmul.f32 %v312, %v308
      %v318 = vadd.f32 %v316, %v317
      %v319 = vadd.f32 %v305, %v318
      %v320 = vld [vmem:[%s276 + $0x3] sm:$0x1]
      %v321 = vld [vmem:[%s278 + $0x3] sm:$0x1]
      %v322 = vld [vmem:[%s258] sm:$0xf]
      %v323 = vld [vmem:[%s260] sm:$0xf]
      %v324 = vperm.slane %v320, 0
      %v325 = vmul.f32 %v324, %v322
      %v326 = vperm.slane %v321, 0
      %v327 = vmul.f32 %v326, %v323
      %v328 = vsub.f32 %v325, %v327
      %v329 = vadd.f32 %v315, %v328
      %v330 = vmul.f32 %v324, %v323
      %v331 = vmul.f32 %v326, %v322
      %v332 = vadd.f32 %v330, %v331
      %v333 = vadd.f32 %v319, %v332
      %s334 = scalar_lea.vmem %s206, 8
      %335 = vst.msk [vmem:[%s334] sm:$0xf] %vm272, %v329
      %s336 = scalar_lea.vmem %s206, 12
      %337 = vst.msk [vmem:[%s336] sm:$0xf] %vm272, %v333
      %s338 = smul.u32 2, %s18
      %p339 = scmp.lt.s32.totalorder %s17, 1
      %s340 = scalar_select %p339, %s17, 1
      %p341 = scmp.lt.s32.totalorder %s338, 1
      %s342 = scalar_select %p341, %s338, 1
      %s343 = smul.addr %s342, 2
      %s344 = smul.addr %s340, 4
      %s345 = sadd.s32 %s343, %s344
      %s346 = smul.addr %s345, 4
      %s347 = scalar_lea.vmem %s2, %s346
      // Predicated region
      $region29: #{spectral_conv2d_forward.1} parent=27 // pred_check
        %p348 = pneg %p99
      $region30: #{spectral_conv2d_forward.1} parent=27 // pred_check_branch
        %350 = sbr.rel (%p348) target = $region32
      $region31: #{spectral_conv2d_forward.1} parent=27 // pred_region
        %s351 = smul.u32 2, %s18
      $region32: #{spectral_conv2d_forward.1} parent=27 // pred_fallthru
        _
    $region28: #{spectral_conv2d_forward.1} parent=5 // pred_fallthru
      _
    %p352 = scmp.le.s32.totalorder 2, %s8
    // Predicated region
    $region33: #{spectral_conv2d_forward.1} parent=5 // pred_check
      %p353 = pneg %p352
    $region34: #{spectral_conv2d_forward.1} parent=5 // pred_check_branch
      %355 = sbr.rel (%p353) target = $region36
    $region35: #{spectral_conv2d_forward.1} parent=5 // pred_region
      %s356 = ssub.s32 %s8, 2
      // Predicated region
      $region37: #{spectral_conv2d_forward.1} parent=35 // pred_check
        %p357 = pneg %p105
      $region38: #{spectral_conv2d_forward.1} parent=35 // pred_check_branch
        %359 = sbr.rel (%p357) target = $region40
      $region39: #{spectral_conv2d_forward.1} parent=35 // pred_region
        %s360 = smul.u32 2, %s20
        %p361 = scmp.lt.s32.totalorder %s19, 1
        %s362 = scalar_select %p361, %s19, 1
        %p363 = scmp.lt.s32.totalorder %s360, 1
        %s364 = scalar_select %p363, %s360, 1
        %s365 = smul.addr %s364, 2
        %s366 = smul.addr %s362, 4
        %s367 = sadd.s32 %s365, %s366
        %s368 = smul.addr %s367, 4
        %s369 = scalar_lea.vmem %s2, %s368
      $region40: #{spectral_conv2d_forward.1} parent=35 // pred_fallthru
        _
    $region36: #{spectral_conv2d_forward.1} parent=5 // pred_fallthru
      _
  $region6: #{spectral_conv2d_forward.1} parent=0 // loop_footer
    %s12 = sadd.s32 1, %s8
  $region7: #{spectral_conv2d_forward.1} parent=0 // loop_footer_branch
    %7 = sbr.rel target = $region3
  $region8: #{spectral_conv2d_forward.1} parent=0 // loop_exit
    _

</llo_original>
